<compile_context>
chip_gen: v7x
topology: tpu7x:2x2x1
jax: 0.10.0
libtpu: 0.0.40
codegen_flags: <defaults>
</compile_context>

<pallas_src>
import jax
import jax.numpy as jnp
from jax import lax
from jax.experimental import pallas as pl
from jax.experimental.pallas import tpu as pltpu

EPS = 1e-6                    # matches F.pairwise_distance default eps
_LANES = 128
_MAX_TILE_ROWS = 4096         # amortizes the ~0.35 us per-grid-step overhead


def _tpu_config():
    """Best-effort, generation-aware (VMEM capacity, TensorCore count) with safe fallbacks."""
    vmem_cap = 128 * 1024 * 1024
    num_cores = 1
    try:
        info = pltpu.get_tpu_info()
        cap = getattr(info, "vmem_capacity_bytes", None)
        if cap:
            vmem_cap = int(cap)
        for name in ("num_tensorcores", "tensorcores_per_chip", "num_cores",
                     "cores_per_chip", "core_count"):
            v = getattr(info, name, None)
            if v:
                num_cores = max(1, int(v))
                break
    except Exception:
        pass
    return vmem_cap, min(num_cores, 2)


def _make_kernel(margin, n_rows, tile_r, nbc, mask_from, need_mask, use_seg):
    """Grid = (C, nbc); axis 0 parallel (per-core batch split), axis 1 reduction."""
    margin = float(margin)
    iota_axis = 1 if use_seg else 0      # packed rows live along lanes in the dense tail

    def kernel(*refs):
        if use_seg:
            x1_ref, x2_ref, lbl_ref, seg_ref, out_ref, acc_ref = refs
        else:
            x1_ref, x2_ref, lbl_ref, out_ref, acc_ref = refs

        c = pl.program_id(0)
        j = pl.program_id(1)

        @pl.when(j == 0)
        def _():
            acc_ref[...] = jnp.zeros_like(acc_ref)

        # Hot path: dense VPU elementwise on the (tile_r, L) block, one small MXU matmul,
        # one EUP sqrt, then a few VPU ops on the dense (Gp, tile_r) tail.
        diff = x1_ref[...].astype(jnp.float32) - x2_ref[...].astype(jnp.float32) + EPS
        diff2 = diff * diff
        if use_seg:
            # (Gp, 128) . (tile_r, 128)^T -> (Gp, tile_r): per-original-row squared
            # distance, produced directly in the lane-dense tail orientation.
            d2 = lax.dot_general(seg_ref[...], diff2,
                                 dimension_numbers=(((1,), (1,)), ((), ())),
                                 preferred_element_type=jnp.float32)
        else:
            d2 = jnp.sum(diff2, axis=-1, keepdims=True)        # (tile_r, 1)
        d = jnp.sqrt(d2)
        lbl = lbl_ref[...]
        hinge = jnp.maximum(margin - d, 0.0)
        per = (1.0 - lbl) * d2 + lbl * (hinge * hinge)

        if need_mask:
            b = c * nbc + j                                    # unclamped block id
            is_boundary = b >= mask_from

            @pl.when(jnp.logical_not(is_boundary))
            def _():
                acc_ref[...] += per                            # hot path: no mask ops

            @pl.when(is_boundary)
            def _():
                # Zero ragged-tail rows and the (at most one) duplicated clamped block.
                rows = b * tile_r + lax.broadcasted_iota(jnp.int32, per.shape, iota_axis)
                acc_ref[...] += jnp.where(rows < n_rows, per, 0.0)
        else:
            acc_ref[...] += per

        @pl.when(j == nbc - 1)
        def _():
            out_ref[...] = jnp.full(out_ref.shape, jnp.sum(acc_ref[...]), jnp.float32)

    return kernel


def contrastive_loss(output1, output2, label, margin=2.0, *, tile_rows=None):
    """output1, output2: [B, D] (f32 or bf16); label: [B] (or [B,1]). Returns scalar f32."""
    B, D = output1.shape
    assert output2.shape == (B, D)
    label_f = label.astype(jnp.float32).reshape(-1)
    assert label_f.shape[0] == B

    vmem_cap, num_cores = _tpu_config()
    vmem_limit = max(min(vmem_cap // 2, 96 * 2**20), 16 * 2**20)   # 64 MiB v5e/v6e, 32 MiB v7x
    vmem_budget = min(vmem_limit * 7 // 10, 44 * 2**20)
    isz = jnp.dtype(output1.dtype).itemsize

    # ---- layout selection: lane-dense packing whenever D | 128 and B packs evenly -------
    packed = (D <= _LANES) and (_LANES % D == 0) and (B % (_LANES // D) == 0)
    if packed:
        G = _LANES // D                    # original rows per lane-dense packed row
        Gp = max(8, ((G + 7) // 8) * 8)    # pad to full sublanes; padded rows contribute 0
        L = _LANES
        R = B // G
        x1 = output1.reshape(R, L)         # free, row-major contiguous
        x2 = output2.reshape(R, L)
        # Labels transposed to (Gp, R): lane-dense per-step label blocks; zero-padded rows
        # combined with zero seg rows contribute exactly 0 to the loss.
        lbl = jnp.pad(label_f.reshape(R, G).T, ((0, Gp - G), (0, 0)))
        # (Gp, 128) segment indicator: row g sums lanes [g*D, (g+1)*D); rows >= G are zero.
        seg = (lax.broadcasted_iota(jnp.int32, (Gp, L), 1) // D
               == lax.broadcasted_iota(jnp.int32, (Gp, L), 0)).astype(jnp.float32)
        # Honest VMEM bytes/row: 2 inputs x 2 pipeline buffers, ~3 f32 temporaries of the
        # (tile_r, L) block, double-buffered (Gp, tile_r) labels, accumulator, ~4 tail temps.
        bytes_per_row = 4 * L * isz + 3 * L * 4 + (2 + 1 + 4) * Gp * 4
        align = _LANES                     # (Gp, tile_r) label block lane-dim constraint
    else:
        G, Gp, L, R = 1, 1, D, B
        x1, x2 = output1, output2
        lbl = label_f.reshape(R, 1)
        seg = None
        lanes_pad = ((L + _LANES - 1) // _LANES) * _LANES
        bytes_per_row = 4 * lanes_pad * isz + 3 * lanes_pad * 4 + (2 + 1 + 4) * _LANES * 4
        align = 32                         # covers the (8,128) rule and bf16/int8 packing

    # ---- tile sizing against the generation-aware VMEM budget ---------------------------
    if tile_rows is None:
        tile_r = min(vmem_budget // bytes_per_row, _MAX_TILE_ROWS)
    else:
        tile_r = int(tile_rows)
    if R <= tile_r:
        tile_r = R                         # single block (block == full dim is always legal)
    else:
        tile_r = max(align, (tile_r // align) * align)

    nb = pl.cdiv(R, tile_r)                # total row blocks
    C = num_cores if (num_cores > 1 and nb >= 2 * num_cores) else 1
    nbc = pl.cdiv(nb, C)                   # row blocks per core
    ragged = nb * tile_r != R
    dup = C * nbc != nb                    # at most one duplicated (clamped) block
    need_mask = ragged or dup
    mask_from = (nb - 1) if ragged else nb

    if dup:
        def row_block(c, j):
            # Clamp keeps the DMA in bounds for the extra step; its rows are masked to 0.
            return jnp.minimum(c * nbc + j, nb - 1)
    else:
        def row_block(c, j):
            return c * nbc + j

    in_specs = [
        pl.BlockSpec((tile_r, L), lambda c, j: (row_block(c, j), 0)),
        pl.BlockSpec((tile_r, L), lambda c, j: (row_block(c, j), 0)),
    ]
    operands = [x1, x2]
    if packed:
        in_specs.append(pl.BlockSpec((Gp, tile_r), lambda c, j: (0, row_block(c, j))))
        operands.append(lbl)
        in_specs.append(pl.BlockSpec((Gp, L), lambda c, j: (0, 0)))   # resident indicator
        operands.append(seg)
        acc_shape = (Gp, tile_r)
    else:
        in_specs.append(pl.BlockSpec((tile_r, 1), lambda c, j: (row_block(c, j), 0)))
        operands.append(lbl)
        acc_shape = (tile_r, 1)

    kernel = _make_kernel(margin, R, tile_r, nbc, mask_from, need_mask, packed)

    out = pl.pallas_call(
        kernel,
        out_shape=jax.ShapeDtypeStruct((1, C * _LANES), jnp.float32),  # per-core partials
        grid_spec=pltpu.PrefetchScalarGridSpec(
            num_scalar_prefetch=0,
            grid=(C, nbc),
            in_specs=in_specs,
            out_specs=pl.BlockSpec((1, _LANES), lambda c, j: (0, c)),
            scratch_shapes=[pltpu.VMEM(acc_shape, jnp.float32)],
        ),
        compiler_params=pltpu.CompilerParams(
            dimension_semantics=("parallel", "arbitrary"),
            vmem_limit_bytes=int(vmem_limit),
        ),
    )(*operands)

    partials = out.reshape(C, _LANES)[:, 0]          # one partial sum per (virtual) core
    return jnp.sum(partials) / jnp.float32(B)
    # TODO(synk): forward-only; no custom_vjp for the backward pass is provided here.


def _reference_loss(o1, o2, label, margin=2.0):
    o1 = o1.astype(jnp.float32)
    o2 = o2.astype(jnp.float32)
    label = label.astype(jnp.float32).reshape(-1)
    d = jnp.sqrt(jnp.sum(jnp.square(o1 - o2 + EPS), axis=-1))
    return jnp.mean((1.0 - label) * d**2 + label * jnp.maximum(margin - d, 0.0) ** 2)


if __name__ == "__main__":
    key = jax.random.PRNGKey(0)
    k1, k2, k3 = jax.random.split(key, 3)

    def check(name, o1, o2, lbl, **kw):
        loss = contrastive_loss(o1, o2, lbl, margin=2.0, **kw)
        jax.block_until_ready(loss)
        ref = _reference_loss(o1, o2, lbl, margin=2.0)
        assert jnp.allclose(loss, ref, rtol=1e-5, atol=1e-5), (name, loss, ref)

    # 1) Small Siamese head: B=16, D=32 -> lane-dense packed path, single block.
    B, D = 16, 32
    o1 = jax.random.normal(k1, (B, D), dtype=jnp.float32)
    o2 = jax.random.normal(k2, (B, D), dtype=jnp.float32)
    lbl = jax.random.bernoulli(k3, 0.5, (B,)).astype(jnp.float32)
    check("packed-single", o1, o2, lbl)

    # 2) Packed multi-block + ragged tail: boundary-only masking path.
    B2, D2 = 1056, 32
    o1b = jax.random.normal(k1, (B2, D2), dtype=jnp.float32)
    o2b = jax.random.normal(k2, (B2, D2), dtype=jnp.float32)
    lblb = jax.random.bernoulli(k3, 0.5, (B2,)).astype(jnp.float32)
    check("packed-multi", o1b, o2b, lblb, tile_rows=128)

    # 3) Fallback path (D not lane-packable), ragged multi-block.
    B3, D3 = 100, 160
    o1c = jax.random.normal(k1, (B3, D3), dtype=jnp.float32)
    o2c = jax.random.normal(k2, (B3, D3), dtype=jnp.float32)
    lblc = jax.random.bernoulli(k3, 0.5, (B3,)).astype(jnp.float32)
    check("fallback-multi", o1c, o2c, lblc, tile_rows=32)

    # 4) bf16 embeddings: cast happens in-kernel (halves HBM traffic vs wrapper upcast).
    check("packed-bf16", o1.astype(jnp.bfloat16), o2.astype(jnp.bfloat16), lbl)

    # 5) D == 128 (trivially packed, dense tail), automatic tile sizing.
    B5, D5 = 64, 128
    o1e = jax.random.normal(k1, (B5, D5), dtype=jnp.float32)
    o2e = jax.random.normal(k2, (B5, D5), dtype=jnp.float32)
    lble = jax.random.bernoulli(k3, 0.5, (B5,)).astype(jnp.float32)
    check("packed-d128", o1e, o2e, lble)

    print("KERNEL_OK")
</pallas_src>

<mosaic_0001>
module attributes {stable_mosaic.version = 11 : i64} {
  func.func @kernel(%arg0: i32, %arg1: i32, %arg2: memref<4x128xf32, #tpu.memory_space<vmem>>, %arg3: memref<4x128xf32, #tpu.memory_space<vmem>>, %arg4: memref<8x4xf32, #tpu.memory_space<vmem>>, %arg5: memref<8x128xf32, #tpu.memory_space<vmem>>, %arg6: memref<1x128xf32, #tpu.memory_space<vmem>>, %arg7: memref<8x4xf32, #tpu.memory_space<vmem>>) attributes {dimension_semantics = [#tpu.dimension_semantics<parallel>, #tpu.dimension_semantics<arbitrary>], iteration_bounds = array<i64: 1, 1>, scalar_prefetch = 0 : i64, scratch_operands = 1 : i64, tpu.core_type = #tpu.core_type<tc>, window_params = [{transform_indices = @transform_0, window_bounds = array<i64: 4, 128>}, {transform_indices = @transform_1, window_bounds = array<i64: 4, 128>}, {transform_indices = @transform_2, window_bounds = array<i64: 8, 4>}, {pipeline_mode = #tpu.pipeline_mode<synchronous>, transform_indices = @transform_3, window_bounds = array<i64: 8, 128>}, {transform_indices = @transform_4, window_bounds = array<i64: 1, 128>}]} {
    %c0_i32 = arith.constant 0 : i32
    %0 = arith.cmpi eq, %arg1, %c0_i32 : i32
    %1 = arith.extui %0 : i1 to i32
    %c0_i32_0 = arith.constant 0 : i32
    %2 = arith.cmpi ne, %1, %c0_i32_0 : i32
    scf.if %2 {
      %cst_18 = arith.constant 0.000000e+00 : f32
      %29 = vector.broadcast %cst_18 : f32 to vector<8x4xf32>
      %c0_19 = arith.constant 0 : index
      %c0_20 = arith.constant 0 : index
      %30 = vector.load %arg7[%c0_19, %c0_20] : memref<8x4xf32, #tpu.memory_space<vmem>>, vector<8x4xf32>
      tpu.vector_store %arg7[%c0_19, %c0_20], %29 {strides = array<i32>} : memref<8x4xf32, #tpu.memory_space<vmem>>, vector<8x4xf32>,
    } else {
    }
    %c0 = arith.constant 0 : index
    %c0_1 = arith.constant 0 : index
    %3 = vector.load %arg2[%c0, %c0_1] : memref<4x128xf32, #tpu.memory_space<vmem>>, vector<4x128xf32>
    %c0_2 = arith.constant 0 : index
    %c0_3 = arith.constant 0 : index
    %4 = vector.load %arg3[%c0_2, %c0_3] : memref<4x128xf32, #tpu.memory_space<vmem>>, vector<4x128xf32>
    %5 = arith.subf %3, %4 : vector<4x128xf32>
    %cst = arith.constant 9.99999997E-7 : f32
    %6 = vector.broadcast %cst : f32 to vector<4x128xf32>
    %7 = arith.addf %5, %6 : vector<4x128xf32>
    %8 = arith.mulf %7, %7 : vector<4x128xf32>
    %c0_4 = arith.constant 0 : index
    %c0_5 = arith.constant 0 : index
    %9 = vector.load %arg5[%c0_4, %c0_5] : memref<8x128xf32, #tpu.memory_space<vmem>>, vector<8x128xf32>
    %cst_6 = arith.constant dense<0.000000e+00> : vector<8x4xf32>
    %10 = tpu.matmul %9, %8, %cst_6 {dimension_numbers = #tpu.dot_dimension_numbers<[1], [1], [0], [0], [0, 0, 1, 0], [], []>} : vector<8x128xf32>, vector<4x128xf32>, vector<8x4xf32> -> vector<8x4xf32>
    %11 = math.sqrt %10 : vector<8x4xf32>
    %c0_7 = arith.constant 0 : index
    %c0_8 = arith.constant 0 : index
    %12 = vector.load %arg4[%c0_7, %c0_8] : memref<8x4xf32, #tpu.memory_space<vmem>>, vector<8x4xf32>
    %cst_9 = arith.constant 2.000000e+00 : f32
    %13 = vector.broadcast %cst_9 : f32 to vector<8x4xf32>
    %14 = arith.subf %13, %11 : vector<8x4xf32>
    %cst_10 = arith.constant 0.000000e+00 : f32
    %15 = vector.broadcast %cst_10 : f32 to vector<8x4xf32>
    %16 = arith.maximumf %14, %15 : vector<8x4xf32>
    %cst_11 = arith.constant 1.000000e+00 : f32
    %17 = vector.broadcast %cst_11 : f32 to vector<8x4xf32>
    %18 = arith.subf %17, %12 : vector<8x4xf32>
    %19 = arith.mulf %18, %10 : vector<8x4xf32>
    %20 = arith.mulf %16, %16 : vector<8x4xf32>
    %21 = arith.mulf %12, %20 : vector<8x4xf32>
    %22 = arith.addf %19, %21 : vector<8x4xf32>
    %c0_12 = arith.constant 0 : index
    %c0_13 = arith.constant 0 : index
    %23 = vector.load %arg7[%c0_12, %c0_13] : memref<8x4xf32, #tpu.memory_space<vmem>>, vector<8x4xf32>
    %24 = arith.addf %23, %22 : vector<8x4xf32>
    %c0_14 = arith.constant 0 : index
    %c0_15 = arith.constant 0 : index
    %25 = vector.load %arg7[%c0_14, %c0_15] : memref<8x4xf32, #tpu.memory_space<vmem>>, vector<8x4xf32>
    tpu.vector_store %arg7[%c0_14, %c0_15], %24 {strides = array<i32>} : memref<8x4xf32, #tpu.memory_space<vmem>>, vector<8x4xf32>,
    %c0_i32_16 = arith.constant 0 : i32
    %26 = arith.cmpi eq, %arg1, %c0_i32_16 : i32
    %27 = arith.extui %26 : i1 to i32
    %c0_i32_17 = arith.constant 0 : i32
    %28 = arith.cmpi ne, %27, %c0_i32_17 : i32
    scf.if %28 {
      %c0_18 = arith.constant 0 : index
      %c0_19 = arith.constant 0 : index
      %29 = vector.load %arg7[%c0_18, %c0_19] : memref<8x4xf32, #tpu.memory_space<vmem>>, vector<8x4xf32>
      %30 = vector.shape_cast %29 : vector<8x4xf32> to vector<1x8x4xf32>
      %cst_20 = arith.constant dense<0.000000e+00> : vector<1xf32>
      %31 = vector.multi_reduction <add>, %30, %cst_20 [1, 2] : vector<1x8x4xf32> to vector<1xf32>
      %32 = vector.shape_cast %31 : vector<1xf32> to vector<1x1x1xf32>
      %33 = vector.extract %32[0, 0, 0] : f32 from vector<1x1x1xf32>
      %34 = vector.broadcast %33 : f32 to vector<1x128xf32>
      %c0_21 = arith.constant 0 : index
      %c0_22 = arith.constant 0 : index
      %35 = vector.load %arg6[%c0_21, %c0_22] : memref<1x128xf32, #tpu.memory_space<vmem>>, vector<1x128xf32>
      tpu.vector_store %arg6[%c0_21, %c0_22], %34 {strides = array<i32>} : memref<1x128xf32, #tpu.memory_space<vmem>>, vector<1x128xf32>,
    } else {
    }
    return
  }
  func.func @transform_0(%arg0: i32, %arg1: i32) -> (i32, i32) {
    %c1_i32 = arith.constant 1 : i32
    %0 = arith.muli %arg0, %c1_i32 : i32
    %1 = arith.addi %0, %arg1 : i32
    %c0_i32 = arith.constant 0 : i32
    %c0_i32_0 = arith.constant 0 : i32
    return %1, %c0_i32 : i32, i32
  }
  func.func @transform_1(%arg0: i32, %arg1: i32) -> (i32, i32) {
    %c1_i32 = arith.constant 1 : i32
    %0 = arith.muli %arg0, %c1_i32 : i32
    %1 = arith.addi %0, %arg1 : i32
    %c0_i32 = arith.constant 0 : i32
    %c0_i32_0 = arith.constant 0 : i32
    return %1, %c0_i32 : i32, i32
  }
  func.func @transform_2(%arg0: i32, %arg1: i32) -> (i32, i32) {
    %c1_i32 = arith.constant 1 : i32
    %0 = arith.muli %arg0, %c1_i32 : i32
    %1 = arith.addi %0, %arg1 : i32
    %c0_i32 = arith.constant 0 : i32
    %c0_i32_0 = arith.constant 0 : i32
    return %c0_i32, %1 : i32, i32
  }
  func.func @transform_3(%arg0: i32, %arg1: i32) -> (i32, i32) {
    %c0_i32 = arith.constant 0 : i32
    %c0_i32_0 = arith.constant 0 : i32
    %c0_i32_1 = arith.constant 0 : i32
    return %c0_i32, %c0_i32_0 : i32, i32
  }
  func.func @transform_4(%arg0: i32, %arg1: i32) -> (i32, i32) {
    %c0_i32 = arith.constant 0 : i32
    %c0_i32_0 = arith.constant 0 : i32
    return %c0_i32, %arg0 : i32, i32
  }
}

</mosaic_0001>

<llo_original>
// kernel: tpu_custom_call.1
$region0: #{tpu_custom_call.1}
  #allocation0 [shape = 'u32[]', space=smem, size = 0x4, offset = 0x4, fixed_abs, tag = 'smem constant byte address 0x4 - core index']
  #allocation1 [shape = 'u32[144,128]{1,0:T(1,128)}', space=vmem, size = 0x12000, scoped, tag = 'internal scratch']
  #allocation2 [shape = 'f32[8,4]{1,0:T(8,128)}', space=vmem, size = 0x1000, scoped, tag = 'scratch operand']
  %s0 = inlined_call_operand.hbm [shape: f32[4,128], index: 0, kind: input, shape index: {}]
  %s1 = inlined_call_operand.hbm [shape: f32[4,128], index: 1, kind: input, shape index: {}]
  %s2 = inlined_call_operand.hbm [shape: f32[8,4], index: 2, kind: input, shape index: {}]
  %s3 = inlined_call_operand.hbm [shape: f32[8,128], index: 3, kind: input, shape index: {}]
  %s4 = inlined_call_operand.hbm [shape: f32[1,128], index: 4, kind: output, shape index: {}]
  %s5 = sld [smem:[#allocation0]]
  $region50: #{tpu_custom_call.1} parent=0
    _
  %s7 = ssub.s32 1, %s5
  %s8 = scalar_select 0, %s7, %s5
  $region1: #{tpu_custom_call.1} parent=0
    #allocation3 [shape = 'u8[2048]{0}', space=vmem, size = 0x800, scoped, tag = 'input window, operand 0, single buffered']
    #allocation4 [shape = 's32[1]{0}', space=sflag, size = 0x4, scoped, tag = 'scoped memory for tpu_custom_call.1']
    #allocation5 [shape = 's32[1]{0}', space=sflag, size = 0x4, scoped, tag = 'scoped memory for tpu_custom_call.1']
    #allocation6 [shape = 'u8[2048]{0}', space=vmem, size = 0x800, scoped, tag = 'input window, operand 1, single buffered']
    #allocation7 [shape = 's32[1]{0}', space=sflag, size = 0x4, scoped, tag = 'scoped memory for tpu_custom_call.1']
    #allocation8 [shape = 'u8[4096]{0}', space=vmem, size = 0x1000, scoped, tag = 'input window, operand 2, single buffered']
    #allocation9 [shape = 'u8[4096]{0}', space=vmem, size = 0x1000, scoped, tag = 'input window, operand 3, single buffered']
    #allocation10 [shape = 's32[1]{0}', space=sflag, size = 0x4, scoped, tag = 'scoped memory for tpu_custom_call.1']
    #allocation11 [shape = 'u8[512]{0}', space=vmem, size = 0x400, scoped, tag = 'output window, operand 0, single buffered']
    %9 = vsyncpa [#allocation4], 0
    %10 = vsyncpa [#allocation7], 0
    %11 = vsyncpa [#allocation10], 0
    %12 = vsyncpa [#allocation5], 0
    // Predicated region
    $region2: #{tpu_custom_call.1} parent=1 // pred_check
      _
    $region3: #{tpu_custom_call.1} parent=1 // pred_check_branch
      %14 = sbr.rel (0) target = $region5
    $region4: #{tpu_custom_call.1} parent=1 // pred_region
      %s15 = sadd.s32 0, 0
      %s17 = ssub.s32 64, 64
      %18 = vsyncadd [#allocation4], %s17
      %s19 = smul.addr %s15, 64
      %s20 = scalar_lea.hbm %s0, %s19
      %s22 = sshll.u32 [#allocation3], 4
      %s23 = int_to_ptr.vmem [resolvable:$true] %s22
      %25 = dma.hbm_to_vmem [thread:$0]  %s20, 64, %s23, [#allocation4]
    $region5: #{tpu_custom_call.1} parent=1 // pred_fallthru
      _
    // Predicated region
    $region6: #{tpu_custom_call.1} parent=1 // pred_check
      _
    $region7: #{tpu_custom_call.1} parent=1 // pred_check_branch
      %27 = sbr.rel (0) target = $region9
    $region8: #{tpu_custom_call.1} parent=1 // pred_region
      %s28 = sadd.s32 0, 0
      %s30 = ssub.s32 64, 64
      %31 = vsyncadd [#allocation7], %s30
      %s32 = smul.addr %s28, 64
      %s33 = scalar_lea.hbm %s1, %s32
      %s35 = sshll.u32 [#allocation6], 4
      %s36 = int_to_ptr.vmem [resolvable:$true] %s35
      %38 = dma.hbm_to_vmem [thread:$0]  %s33, 64, %s36, [#allocation7]
    $region9: #{tpu_custom_call.1} parent=1 // pred_fallthru
      _
    // Predicated region
    $region10: #{tpu_custom_call.1} parent=1 // pred_check
      _
    $region11: #{tpu_custom_call.1} parent=1 // pred_check_branch
      %40 = sbr.rel (0) target = $region13
    $region12: #{tpu_custom_call.1} parent=1 // pred_region
      %s41 = sadd.s32 0, 0
      %s43 = ssub.s32 128, 128
      %44 = vsyncadd [#allocation7], %s43
      %s45 = smul.addr %s41, 128
      %s46 = scalar_lea.hbm %s2, %s45
      %s48 = sshll.u32 [#allocation8], 4
      %s49 = int_to_ptr.vmem [resolvable:$true] %s48
      %51 = dma.hbm_to_vmem [thread:$0]  %s46, 128, %s49, [#allocation7]
    $region13: #{tpu_custom_call.1} parent=1 // pred_fallthru
      _
    // Predicated region
    $region14: #{tpu_custom_call.1} parent=1 // pred_check
      _
    $region15: #{tpu_custom_call.1} parent=1 // pred_check_branch
      %53 = sbr.rel (0) target = $region17
    $region16: #{tpu_custom_call.1} parent=1 // pred_region
      %s55 = ssub.s32 128, 128
      %56 = vsyncadd [#allocation10], %s55
      %s58 = sshll.u32 [#allocation9], 4
      %s59 = int_to_ptr.vmem [resolvable:$true] %s58
      %61 = dma.hbm_to_vmem [thread:$0]  %s3, 128, %s59, [#allocation10]
    $region17: #{tpu_custom_call.1} parent=1 // pred_fallthru
      _
    // Predicated region
    $region18: #{tpu_custom_call.1} parent=1 // pred_check
      _
    $region19: #{tpu_custom_call.1} parent=1 // pred_check_branch
      %63 = sbr.rel (0) target = $region21
    $region20: #{tpu_custom_call.1} parent=1 // pred_region
      %64 = dma.done [#allocation4], 64
    $region21: #{tpu_custom_call.1} parent=1 // pred_fallthru
      _
    // Predicated region
    $region22: #{tpu_custom_call.1} parent=1 // pred_check
      _
    $region23: #{tpu_custom_call.1} parent=1 // pred_check_branch
      %66 = sbr.rel (0) target = $region25
    $region24: #{tpu_custom_call.1} parent=1 // pred_region
      %67 = dma.done [#allocation7], 64
    $region25: #{tpu_custom_call.1} parent=1 // pred_fallthru
      _
    // Predicated region
    $region26: #{tpu_custom_call.1} parent=1 // pred_check
      _
    $region27: #{tpu_custom_call.1} parent=1 // pred_check_branch
      %69 = sbr.rel (0) target = $region29
    $region28: #{tpu_custom_call.1} parent=1 // pred_region
      %70 = dma.done [#allocation7], 128
    $region29: #{tpu_custom_call.1} parent=1 // pred_fallthru
      _
    // Predicated region
    $region30: #{tpu_custom_call.1} parent=1 // pred_check
      _
    $region31: #{tpu_custom_call.1} parent=1 // pred_check_branch
      %72 = sbr.rel (0) target = $region33
    $region32: #{tpu_custom_call.1} parent=1 // pred_region
      %73 = dma.done [#allocation10], 128
    $region33: #{tpu_custom_call.1} parent=1 // pred_fallthru
      _
    %s74 = sadd.s32 0, 0
    %s75 = sadd.s32 0, 0
    %s76 = sadd.s32 0, 0
    %p77 = scmp.eq.s32.totalorder 0, 0
    // Predicated region
    $region34: #{tpu_custom_call.1} parent=1 // pred_check
      %p78 = pneg %p77
    $region35: #{tpu_custom_call.1} parent=1 // pred_check_branch
      %80 = sbr.rel (%p78) target = $region37
    $region36: #{tpu_custom_call.1} parent=1 // pred_region
      %vm81 = vcmask 31744
      %82 = vst.msk [vmem:[#allocation2] sm:$0xff] %vm81, 0.0
    $region37: #{tpu_custom_call.1} parent=1 // pred_fallthru
      _
    %v83 = vld [vmem:[#allocation3] sm:$0xf]
    %v84 = vld [vmem:[#allocation6] sm:$0xf]
    %v85 = vsub.f32 %v83, %v84
    %v86 = vadd.f32 %v85, 1e-06
    %v87 = vmul.f32 %v86, %v86
    %v88 = vld [vmem:[#allocation9] sm:$0xff]
    %89 = vmatprep.subr.mxu0 0.0
    %90 = vmatpush1.xpose.msra.mxu0 %v87
    %91 = vmatprep.subr.mxu0 0.0
    %92 = vmatpush1.xpose.msra.mxu0 0.0
    %93 = vmatprep.subr.mxu0 0.0
    %94 = vmatpush1.xpose.msra.mxu0 0.0
    %95 = vmatprep.subr.mxu0 0.0
    %96 = vmatpush1.xpose.msra.mxu0 0.0
    %97 = vmatprep.subr.mxu0 0.0
    %98 = vmatpush1.xpose.msra.mxu0 0.0
    %99 = vmatprep.subr.mxu0 0.0
    %100 = vmatpush1.xpose.msra.mxu0 0.0
    %101 = vmatprep.subr.mxu0 0.0
    %102 = vmatpush1.xpose.msra.mxu0 0.0
    %103 = vmatprep.subr.mxu0 0.0
    %104 = vmatpush1.xpose.msra.mxu0 0.0
    %105 = vmatprep.subr.mxu0 0.0
    %106 = vmatpush1.xpose.msra.mxu0 0.0
    %107 = vmatprep.subr.mxu0 0.0
    %108 = vmatpush1.xpose.msra.mxu0 0.0
    %109 = vmatprep.subr.mxu0 0.0
    %110 = vmatpush1.xpose.msra.mxu0 0.0
    %111 = vmatprep.subr.mxu0 0.0
    %112 = vmatpush1.xpose.msra.mxu0 0.0
    %113 = vmatprep.subr.mxu0 0.0
    %114 = vmatpush1.xpose.msra.mxu0 0.0
    %115 = vmatprep.subr.mxu0 0.0
    %116 = vmatpush1.xpose.msra.mxu0 0.0
    %117 = vmatprep.subr.mxu0 0.0
    %118 = vmatpush1.xpose.msra.mxu0 0.0
    %119 = vmatprep.subr.mxu0 0.0
    %120 = vmatpush1.xpose.msra.mxu0 0.0
    %121 = vmatprep.subr.mxu0 0.0
    %122 = vmatpush1.xpose.msra.mxu0 0.0
    %123 = vmatprep.subr.mxu0 0.0
    %124 = vmatpush1.xpose.msra.mxu0 0.0
    %125 = vmatprep.subr.mxu0 0.0
    %126 = vmatpush1.xpose.msra.mxu0 0.0
    %127 = vmatprep.subr.mxu0 0.0
    %128 = vmatpush1.xpose.msra.mxu0 0.0
    %129 = vmatprep.subr.mxu0 0.0
    %130 = vmatpush1.xpose.msra.mxu0 0.0
    %131 = vmatprep.subr.mxu0 0.0
    %132 = vmatpush1.xpose.msra.mxu0 0.0
    %133 = vmatprep.subr.mxu0 0.0
    %134 = vmatpush1.xpose.msra.mxu0 0.0
    %135 = vmatprep.subr.mxu0 0.0
    %136 = vmatpush1.xpose.msra.mxu0 0.0
    %137 = vmatprep.subr.mxu0 0.0
    %138 = vmatpush1.xpose.msra.mxu0 0.0
    %139 = vmatprep.subr.mxu0 0.0
    %140 = vmatpush1.xpose.msra.mxu0 0.0
    %141 = vmatprep.subr.mxu0 0.0
    %142 = vmatpush1.xpose.msra.mxu0 0.0
    %143 = vmatprep.subr.mxu0 0.0
    %144 = vmatpush1.xpose.msra.mxu0 0.0
    %145 = vmatprep.subr.mxu0 0.0
    %146 = vmatpush1.xpose.msra.mxu0 0.0
    %147 = vmatprep.subr.mxu0 0.0
    %148 = vmatpush1.xpose.msra.mxu0 0.0
    %149 = vmatprep.subr.mxu0 0.0
    %150 = vmatpush1.xpose.msra.mxu0 0.0
    %151 = vmatprep.subr.mxu0 0.0
    %152 = vmatpush1.xpose.msra.mxu0 0.0
    %153 = vmatprep.mubr.f32.mxu0 0.0
    %154 = vmatmul.mubr.f32.gmra.mrb[0].mxu0 %v88
    %v155 = vpop.f32.mrb[0].mxu0
    %v156 = vadd.f32 0.0, %v155
    %v157 = vpop.f32.mrb[0].mxu0
    %158 = vdwg.mxu0
    %v159 = vrsqrt.pop %v156
    %v160 = vmul.f32 %v156, %v159
    %vm161 = vcmp.eq.f32.partialorder %v156, inf
    %v162 = vsel %vm161, %v156, %v160
    %vm163 = vcmp.eq.f32.partialorder %v156, 0.0
    %v164 = vand.u32 %v156, 2147483648
    %v165 = vsel %vm163, %v164, %v162
    %v166 = vld [vmem:[#allocation8] sm:$0xff]
    %v167 = vsub.f32 2.0, %v165
    %v168 = vmax.f32 %v167, 0.0
    %v169 = vsub.f32 1.0, %v166
    %v170 = vmul.f32 %v169, %v156
    %v171 = vmul.f32 %v168, %v168
    %v172 = vmul.f32 %v166, %v171
    %v173 = vadd.f32 %v170, %v172
    %v174 = vld [vmem:[#allocation2] sm:$0xff]
    %v175 = vadd.f32 %v174, %v173
    %vm176 = vcmask 31744
    %177 = vst.msk [vmem:[#allocation2] sm:$0xff] %vm176, %v175
    // Predicated region
    $region38: #{tpu_custom_call.1} parent=1 // pred_check
      %p178 = pneg %p77
    $region39: #{tpu_custom_call.1} parent=1 // pred_check_branch
      %180 = sbr.rel (%p178) target = $region41
    $region40: #{tpu_custom_call.1} parent=1 // pred_region
      %v181 = vld [vmem:[#allocation2] sm:$0xff]
      %v182 = vsel %vm176, %v181, 0.0
      %183 = vadd.xlane.f32.xlu0 %v182
      %v184 = vpop.xlane.xlu0 %183
      %v185 = vrot.slane %v184, 4
      %v186 = vadd.f32 %v184, %v185
      %v187 = vrot.slane %v186, 2
      %v188 = vadd.f32 %v186, %v187
      %v189 = vrot.slane %v188, 1
      %v190 = vadd.f32 %v188, %v189
      %s191 = vtos %v190
      %v192 = vstv %s191
      %193 = vst [vmem:[#allocation11] sm:$0x1] %v192
    $region41: #{tpu_custom_call.1} parent=1 // pred_fallthru
      _
    // Predicated region
    $region42: #{tpu_custom_call.1} parent=1 // pred_check
      _
    $region43: #{tpu_custom_call.1} parent=1 // pred_check_branch
      %195 = sbr.rel (0) target = $region45
    $region44: #{tpu_custom_call.1} parent=1 // pred_region
      %s197 = ssub.s32 16, 16
      %198 = vsyncadd [#allocation5], %s197
      %s200 = sshll.u32 [#allocation11], 4
      %s201 = int_to_ptr.vmem [resolvable:$true] %s200
      %203 = dma.vmem_to_hbm [thread:$0]  %s201, 16, %s4, [#allocation5]
    $region45: #{tpu_custom_call.1} parent=1 // pred_fallthru
      _
    // Predicated region
    $region46: #{tpu_custom_call.1} parent=1 // pred_check
      _
    $region47: #{tpu_custom_call.1} parent=1 // pred_check_branch
      %205 = sbr.rel (0) target = $region49
    $region48: #{tpu_custom_call.1} parent=1 // pred_region
      %206 = dma.done [#allocation5], 16
    $region49: #{tpu_custom_call.1} parent=1 // pred_fallthru
      _
    %207 = vsyncpa [#allocation4], 1
    %208 = vsyncpa [#allocation7], 1
    %209 = vsyncpa [#allocation10], 1
    %210 = vsyncpa [#allocation5], 1

</llo_original>
